<compile_context>
chip_gen: v5e
topology: v5e:2x2
jax: 0.10.0
libtpu: 0.0.40
codegen_flags: <defaults>
</compile_context>

<pallas_src>
import jax
import jax.numpy as jnp
from jax.experimental import pallas as pl
from jax.experimental.pallas import tpu as pltpu

NUM_CLASSES = 2        # is_next / is_not_next
CLS_SUB = 8            # classes padded onto the sublane axis (f32 min sublane tile)


def _round_up(v, m):
    return ((v + m - 1) // m) * m


def _vmem_capacity_bytes():
    try:
        return int(pltpu.get_tpu_info().vmem_capacity_bytes)
    except Exception:
        return 64 * 1024 * 1024   # conservative default (v7x per-TC physical VMEM)


def _nsp_kernel(x_ref, w_ref, b_ref, o_ref):
    """Fused Linear + LogSoftmax, classes on the sublane axis.

    x_ref: (tb, H) activations, w_ref: (8, H) padded weight, b_ref: (8, 1) f32
    padded bias, o_ref: (8, tb) f32 log-probabilities (rows >= 2 are -inf).
    """
    # MXU matmul in "A @ B^T" form (contract both operands on H), f32 accumulate.
    logits = jax.lax.dot_general(
        w_ref[...], x_ref[...],
        dimension_numbers=(((1,), (1,)), ((), ())),
        preferred_element_type=jnp.float32)                    # (8, tb)

    # Mask padded class rows (sublane >= NUM_CLASSES); fold the bias add into
    # the same select.
    row = jax.lax.broadcasted_iota(jnp.int32, logits.shape, 0)
    valid = row < NUM_CLASSES
    masked = jnp.where(valid, logits + b_ref[...], -jnp.inf)

    # Numerically stable log-softmax over the class (sublane) axis.  The kernel
    # is HBM-bound, so this VPU/XLU/EUP work is free filler under the DMA.
    m = jnp.max(masked, axis=0, keepdims=True)                 # (1, tb)
    e = jnp.where(valid, jnp.exp(masked - m), 0.0)
    lse = jnp.log(jnp.sum(e, axis=0, keepdims=True)) + m
    o_ref[...] = masked - lse      # padded rows -> -inf, sliced off in wrapper


@jax.jit
def next_sentence_prediction(x, weight, bias):
    """
    x:      (B, S, H) activations (float32 or bfloat16)
    weight: (2, H)    torch.nn.Linear weight layout
    bias:   (2,)
    returns (B, 2) log-probabilities (float32)
    """
    B, S, H = x.shape
    itemsize = jnp.dtype(x.dtype).itemsize

    # --- CLS gather without a materialized slice ------------------------------
    if H % 128 == 0:
        x2d = x.reshape(B, S * H)      # free view; BlockSpec does the strided gather
    else:
        x2d = x[:, 0, :]               # fallback: lane-unaligned H (e.g. tiny tests)

    # --- generation-aware tile sizing -----------------------------------------
    vmem_cap = _vmem_capacity_bytes()
    vmem_limit = min(vmem_cap * 3 // 4, 100 * 1024 * 1024)
    per_row = 2 * (H * itemsize + CLS_SUB * 4)             # double-buffered x + out
    params = 2 * (CLS_SUB * H * itemsize + CLS_SUB * 4)    # resident weight + bias
    usable = max(per_row * 128, vmem_limit - params - (2 << 20))
    cap = max(128, min(4096, (usable // per_row) // 128 * 128))
    if B <= 128:
        tb = B                         # single step; full-dim block is always legal
    else:
        # >= 2 grid steps so the "parallel" axis shards across v7x's 2 TensorCores.
        tb = min(cap, _round_up(pl.cdiv(B, 2), 128))
    grid = (pl.cdiv(B, tb),)

    # --- tiny resident parameters (classes padded 2 -> 8 on the sublane axis) --
    wp = jnp.pad(weight.astype(x.dtype), ((0, CLS_SUB - NUM_CLASSES), (0, 0)))
    bp = jnp.pad(bias.astype(jnp.float32),
                 (0, CLS_SUB - NUM_CLASSES)).reshape(CLS_SUB, 1)

    cost = pl.CostEstimate(
        flops=2 * B * H * CLS_SUB,
        transcendentals=B * CLS_SUB,
        bytes_accessed=B * H * itemsize + CLS_SUB * H * itemsize
        + CLS_SUB * B * 4,
    )

    out = pl.pallas_call(
        _nsp_kernel,
        out_shape=jax.ShapeDtypeStruct((CLS_SUB, B), jnp.float32),
        grid=grid,
        in_specs=[
            pl.BlockSpec((tb, H), lambda i: (i, 0)),        # streamed CLS tiles
            pl.BlockSpec((CLS_SUB, H), lambda i: (0, 0)),   # resident padded weight
            pl.BlockSpec((CLS_SUB, 1), lambda i: (0, 0)),   # resident padded bias
        ],
        out_specs=pl.BlockSpec((CLS_SUB, tb), lambda i: (0, i)),
        compiler_params=pltpu.CompilerParams(
            dimension_semantics=("parallel",),              # v7x: 2 TensorCores
            vmem_limit_bytes=int(vmem_limit)),
        cost_estimate=cost,
    )(x2d, wp, bp)

    # (8, B) class-major result -> (B, 2): tiny slice + transpose, fused under jit.
    return out[:NUM_CLASSES, :].T


if __name__ == "__main__":
    key = jax.random.PRNGKey(0)
    k_x, k_w, k_b, k_x2, k_w2, k_b2 = jax.random.split(key, 6)

    # Small shapes matching the module spec (fallback slice path, H % 128 != 0).
    batch, seq, hidden = 2, 8, 32
    x = jax.random.normal(k_x, (batch, seq, hidden), dtype=jnp.float32)
    bound = 1.0 / (hidden ** 0.5)
    weight = jax.random.uniform(k_w, (NUM_CLASSES, hidden),
                                minval=-bound, maxval=bound, dtype=jnp.float32)
    bias = jax.random.uniform(k_b, (NUM_CLASSES,),
                              minval=-bound, maxval=bound, dtype=jnp.float32)

    out = jax.block_until_ready(next_sentence_prediction(x, weight, bias))
    ref = jax.nn.log_softmax(x[:, 0] @ weight.T + bias, axis=-1)
    assert out.shape == (batch, NUM_CLASSES)
    assert jnp.allclose(out, ref, atol=1e-5, rtol=1e-5)

    # Second small check exercising the zero-copy CLS-gather path (H % 128 == 0).
    b2, s2, h2 = 16, 4, 128
    x2 = jax.random.normal(k_x2, (b2, s2, h2), dtype=jnp.float32)
    bound2 = 1.0 / (h2 ** 0.5)
    w2 = jax.random.uniform(k_w2, (NUM_CLASSES, h2),
                            minval=-bound2, maxval=bound2, dtype=jnp.float32)
    bb2 = jax.random.uniform(k_b2, (NUM_CLASSES,),
                             minval=-bound2, maxval=bound2, dtype=jnp.float32)
    out2 = jax.block_until_ready(next_sentence_prediction(x2, w2, bb2))
    ref2 = jax.nn.log_softmax(x2[:, 0] @ w2.T + bb2, axis=-1)
    assert out2.shape == (b2, NUM_CLASSES)
    assert jnp.allclose(out2, ref2, atol=1e-5, rtol=1e-5)

    print("KERNEL_OK")
</pallas_src>

<mosaic_0001>
module attributes {stable_mosaic.version = 11 : i64} {
  func.func @_nsp_kernel(%arg0: i32, %arg1: memref<2x32xf32, #tpu.memory_space<vmem>>, %arg2: memref<8x32xf32, #tpu.memory_space<vmem>>, %arg3: memref<8x1xf32, #tpu.memory_space<vmem>>, %arg4: memref<8x2xf32, #tpu.memory_space<vmem>>) attributes {dimension_semantics = [#tpu.dimension_semantics<parallel>], iteration_bounds = array<i64: 1>, scalar_prefetch = 0 : i64, scratch_operands = 0 : i64, tpu.core_type = #tpu.core_type<tc>, window_params = [{transform_indices = @transform_0, window_bounds = array<i64: 2, 32>}, {pipeline_mode = #tpu.pipeline_mode<synchronous>, transform_indices = @transform_1, window_bounds = array<i64: 8, 32>}, {pipeline_mode = #tpu.pipeline_mode<synchronous>, transform_indices = @transform_2, window_bounds = array<i64: 8, 1>}, {transform_indices = @transform_3, window_bounds = array<i64: 8, 2>}]} {
    %c0 = arith.constant 0 : index
    %c0_0 = arith.constant 0 : index
    %0 = vector.load %arg2[%c0, %c0_0] : memref<8x32xf32, #tpu.memory_space<vmem>>, vector<8x32xf32>
    %c0_1 = arith.constant 0 : index
    %c0_2 = arith.constant 0 : index
    %1 = vector.load %arg1[%c0_1, %c0_2] : memref<2x32xf32, #tpu.memory_space<vmem>>, vector<2x32xf32>
    %cst = arith.constant dense<0.000000e+00> : vector<8x2xf32>
    %2 = tpu.matmul %0, %1, %cst {dimension_numbers = #tpu.dot_dimension_numbers<[1], [1], [0], [0], [0, 0, 1, 0], [], []>} : vector<8x32xf32>, vector<2x32xf32>, vector<8x2xf32> -> vector<8x2xf32>
    %3 = tpu.iota {dimensions = array<i32: 0>} : vector<8x2xi32>
    %c2_i32 = arith.constant 2 : i32
    %4 = vector.broadcast %c2_i32 : i32 to vector<8x2xi32>
    %5 = arith.cmpi slt, %3, %4 : vector<8x2xi32>
    %c0_3 = arith.constant 0 : index
    %c0_4 = arith.constant 0 : index
    %6 = vector.load %arg3[%c0_3, %c0_4] : memref<8x1xf32, #tpu.memory_space<vmem>>, vector<8x1xf32>
    %7 = vector.broadcast %6 : vector<8x1xf32> to vector<8x2xf32>
    %8 = arith.addf %2, %7 : vector<8x2xf32>
    %cst_5 = arith.constant 0xFF800000 : f32
    %9 = vector.broadcast %cst_5 : f32 to vector<8x2xf32>
    %10 = arith.select %5, %8, %9 : vector<8x2xi1>, vector<8x2xf32>
    %cst_6 = arith.constant dense<0xFF800000> : vector<2xf32>
    %11 = vector.multi_reduction <maximumf>, %10, %cst_6 [0] : vector<8x2xf32> to vector<2xf32>
    %12 = vector.shape_cast %11 : vector<2xf32> to vector<1x2xf32>
    %13 = vector.broadcast %12 : vector<1x2xf32> to vector<8x2xf32>
    %14 = arith.subf %10, %13 : vector<8x2xf32>
    %15 = math.exp %14 : vector<8x2xf32>
    %cst_7 = arith.constant 0.000000e+00 : f32
    %16 = vector.broadcast %cst_7 : f32 to vector<8x2xf32>
    %17 = arith.select %5, %15, %16 : vector<8x2xi1>, vector<8x2xf32>
    %cst_8 = arith.constant dense<0.000000e+00> : vector<2xf32>
    %18 = vector.multi_reduction <add>, %17, %cst_8 [0] : vector<8x2xf32> to vector<2xf32>
    %19 = vector.shape_cast %18 : vector<2xf32> to vector<1x2xf32>
    %20 = math.log %19 : vector<1x2xf32>
    %21 = arith.addf %20, %12 : vector<1x2xf32>
    %22 = vector.broadcast %21 : vector<1x2xf32> to vector<8x2xf32>
    %23 = arith.subf %10, %22 : vector<8x2xf32>
    %c0_9 = arith.constant 0 : index
    %c0_10 = arith.constant 0 : index
    %24 = vector.load %arg4[%c0_9, %c0_10] : memref<8x2xf32, #tpu.memory_space<vmem>>, vector<8x2xf32>
    tpu.vector_store %arg4[%c0_9, %c0_10], %23 {strides = array<i32>} : memref<8x2xf32, #tpu.memory_space<vmem>>, vector<8x2xf32>,
    return
  }
  func.func @transform_0(%arg0: i32) -> (i32, i32) {
    %c0_i32 = arith.constant 0 : i32
    %c0_i32_0 = arith.constant 0 : i32
    return %arg0, %c0_i32 : i32, i32
  }
  func.func @transform_1(%arg0: i32) -> (i32, i32) {
    %c0_i32 = arith.constant 0 : i32
    %c0_i32_0 = arith.constant 0 : i32
    %c0_i32_1 = arith.constant 0 : i32
    return %c0_i32, %c0_i32_0 : i32, i32
  }
  func.func @transform_2(%arg0: i32) -> (i32, i32) {
    %c0_i32 = arith.constant 0 : i32
    %c0_i32_0 = arith.constant 0 : i32
    %c0_i32_1 = arith.constant 0 : i32
    return %c0_i32, %c0_i32_0 : i32, i32
  }
  func.func @transform_3(%arg0: i32) -> (i32, i32) {
    %c0_i32 = arith.constant 0 : i32
    %c0_i32_0 = arith.constant 0 : i32
    return %c0_i32, %arg0 : i32, i32
  }
}

</mosaic_0001>

<llo_original>
// kernel: next_sentence_prediction.1
$region0: #{next_sentence_prediction.1}
  #allocation0 [shape = 'u32[]', space=smem, size = 0x4, offset = 0x4, fixed_abs, tag = 'smem constant byte address 0x4 - core index']
  #allocation1 [shape = 'u32[72,128]{1,0:T(1,128)}', space=vmem, size = 0x9000, scoped, tag = 'internal scratch']
  %s0 = inlined_call_operand.vmem [shape: f32[2,32], index: 0, kind: input, shape index: {}]
  %s1 = inlined_call_operand.vmem [shape: f32[8,32], index: 1, kind: input, shape index: {}]
  %s2 = inlined_call_operand.vmem [shape: f32[8,1], index: 2, kind: input, shape index: {}]
  %s3 = inlined_call_operand.vmem [shape: f32[8,2], index: 3, kind: output, shape index: {}]
  %s4 = sld [smem:[#allocation0]]
  $region22: #{next_sentence_prediction.1} parent=0
    _
  %s6 = ssub.s32 1, %s4
  %s7 = scalar_select 0, %s6, %s4
  // Predicated region
  $region2: #{next_sentence_prediction.1} parent=0 // pred_check
    _
  $region3: #{next_sentence_prediction.1} parent=0 // pred_check_branch
    %9 = sbr.rel (0) target = $region5
  $region4: #{next_sentence_prediction.1} parent=0 // pred_region
    _
  $region5: #{next_sentence_prediction.1} parent=0 // pred_fallthru
    _
  // Predicated region
  $region6: #{next_sentence_prediction.1} parent=0 // pred_check
    _
  $region7: #{next_sentence_prediction.1} parent=0 // pred_check_branch
    %11 = sbr.rel (0) target = $region9
  $region8: #{next_sentence_prediction.1} parent=0 // pred_region
    _
  $region9: #{next_sentence_prediction.1} parent=0 // pred_fallthru
    _
  // Predicated region
  $region10: #{next_sentence_prediction.1} parent=0 // pred_check
    _
  $region11: #{next_sentence_prediction.1} parent=0 // pred_check_branch
    %13 = sbr.rel (0) target = $region13
  $region12: #{next_sentence_prediction.1} parent=0 // pred_region
    _
  $region13: #{next_sentence_prediction.1} parent=0 // pred_fallthru
    _
  %v14 = vld [vmem:[%s1] sm:$0xff]
  %v15 = vld [vmem:[%s0] sm:$0x3]
  %v16 = vlaneseq
  %v17 = vshrl.u32 %v16, 7
  %vm18 = vcmp.lt.s32.totalorder %v17, 2
  %v19 = vld [vmem:[%s2] sm:$0xff]
  %21 = vset.pattern.permute.xlu0 0
  %22 = vperm.xlu0 %21, %v19
  %v23 = vpop.permute.xlu0 %22
  %vm25 = vcmask 261120
  %v27 = vsel %vm25, %v14, 0
  %v30 = vsel %vm25, %v15, 0
  %32 = vmatpush.xpose.msra.mxu0 0.0
  %33 = vmatpush.xpose.msra.mxu0 0.0
  %34 = vmatpush.xpose.msra.mxu0 0.0
  %35 = vmatpush.xpose.msra.mxu0 0.0
  %36 = vmatpush.xpose.msra.mxu0 0.0
  %37 = vmatpush.xpose.msra.mxu0 0.0
  %38 = vmatpush.xpose.msra.mxu0 0.0
  %39 = vmatpush.xpose.msra.mxu0 0.0
  %40 = vmatpush.xpose.msra.mxu0 0.0
  %41 = vmatpush.xpose.msra.mxu0 0.0
  %42 = vmatpush.xpose.msra.mxu0 0.0
  %43 = vmatpush.xpose.msra.mxu0 0.0
  %44 = vmatpush.xpose.msra.mxu0 0.0
  %45 = vmatpush.xpose.msra.mxu0 0.0
  %46 = vmatpush.xpose.msra.mxu0 0.0
  %47 = vmatpush.xpose.msra.mxu0 %v30
  %48 = vmatmul.f32.gmra.mxu0 %v27
  %v49 = vpop.f32.mrf.mxu0
  %v50 = vadd.f32 %v23, %v49
  %51 = vdwg.mxu0
  %v52 = vsel %vm18, %v50, -inf
  %vm53 = vcmask 15360
  %v54 = vsel %vm53, %v52, -inf
  %v55 = vrot.slane %v54, 4
  %v56 = vmax.f32 %v54, %v55
  %v57 = vrot.slane %v56, 2
  %v58 = vmax.f32 %v56, %v57
  %v59 = vrot.slane %v58, 1
  %v60 = vmax.f32 %v58, %v59
  %v61 = vsub.f32 %v52, %v60
  %v62 = vmul.f32 %v61, 1.442695
  %v63 = vpow.pop %v62
  %v64 = vsel %vm18, %v63, 0.0
  %v65 = vsel %vm53, %v64, 0.0
  %v66 = vrot.slane %v65, 4
  %v67 = vadd.f32 %v65, %v66
  %v68 = vrot.slane %v67, 2
  %v69 = vadd.f32 %v67, %v68
  %v70 = vrot.slane %v69, 1
  %v71 = vadd.f32 %v69, %v70
  %v72 = vlog2.pop %v71
  %v73 = vmul.f32 %v72, 0.6931472
  %v74 = vadd.f32 %v73, %v60
  %v75 = vsub.f32 %v52, %v74
  %76 = vst.msk [vmem:[%s3] sm:$0xff] %vm53, %v75
  // Predicated region
  $region14: #{next_sentence_prediction.1} parent=0 // pred_check
    _
  $region15: #{next_sentence_prediction.1} parent=0 // pred_check_branch
    %78 = sbr.rel (0) target = $region17
  $region16: #{next_sentence_prediction.1} parent=0 // pred_region
    _
  $region17: #{next_sentence_prediction.1} parent=0 // pred_fallthru
    _
  // Predicated region
  $region18: #{next_sentence_prediction.1} parent=0 // pred_check
    _
  $region19: #{next_sentence_prediction.1} parent=0 // pred_check_branch
    %80 = sbr.rel (0) target = $region21
  $region20: #{next_sentence_prediction.1} parent=0 // pred_region
    _
  $region21: #{next_sentence_prediction.1} parent=0 // pred_fallthru
    _

</llo_original>
